<compile_context>
chip_gen: v6e
topology: v6e:2x2x1
jax: 0.10.0
libtpu: 0.0.40
codegen_flags: <defaults>
</compile_context>

<pallas_src>
import functools

import jax
import jax.numpy as jnp
import numpy as np
from jax.experimental import pallas as pl
from jax.experimental.pallas import tpu as pltpu

# Static Net1 hyper-parameters (from the nn.Sequential in __init__).
C_IN, C_OUT = 2, 1
KH, KW = 4, 3
SH, SW = 2, 2
POOL_K, POOL_S = 3, 2

LANE = 128  # TPU lane width


def _net1_kernel(w_ref, b_ref, xp_ref, out_ref, *, ho, wo, po, pw):
    # w_ref:   (KH*KW*C_IN,)                 SMEM  flattened filter, (kh,kw,c) order
    # b_ref:   (1,)                           SMEM  conv bias (scalar)
    # xp_ref:  (2*2*C_IN, h2, w2, N_block)    VMEM  stride-2 phase-split input, batch in lanes
    # out_ref: (po, pw, N_block)              VMEM  pooled + ReLU'd output, batch in lanes

    # ---- Conv2d((4,3), stride=(2,2)) as unrolled broadcast-FMAs on the VPU ----
    # For each (kh, c) pair the even-kw phase row is loaded once (aligned,
    # full-width) and the kw=0 / kw=2 taps are value slices of it, halving the
    # loads for those taps and paying the sublane-offset slice once per pair.
    acc = None
    for kh in range(KH):
        oh = kh // 2
        ph = kh % 2
        for c in range(C_IN):
            p_even = (ph * 2 + 0) * C_IN + c          # phase plane for kw in {0, 2}
            p_odd = (ph * 2 + 1) * C_IN + c           # phase plane for kw == 1
            row_e = xp_ref[p_even, pl.ds(oh, ho), :, :]              # (ho, w2, Nb)
            tap_k1 = xp_ref[p_odd, pl.ds(oh, ho), pl.ds(0, wo), :]   # (ho, wo, Nb)
            w0 = w_ref[(kh * KW + 0) * C_IN + c]
            w1 = w_ref[(kh * KW + 1) * C_IN + c]
            w2s = w_ref[(kh * KW + 2) * C_IN + c]
            term = (row_e[:, 0:wo, :] * w0
                    + tap_k1 * w1
                    + row_e[:, 1:1 + wo, :] * w2s)                   # (ho, wo, Nb)
            acc = term if acc is None else acc + term

    # ---- MaxPool2d(3, stride=2) + bias + ReLU (pure VPU, lane-dense stores) ----
    bias_tile = jnp.full(out_ref.shape[1:], b_ref[0], dtype=jnp.float32)  # hoisted
    for i in range(po):
        # Height pool: maximum tree over three conv rows (elementwise, VPU).
        r = jnp.maximum(jnp.maximum(acc[POOL_S * i], acc[POOL_S * i + 1]),
                        acc[POOL_S * i + 2])                              # (wo, Nb)
        # Width pool: maximum tree over keepdims sublane slices (no XLU reduce).
        cols = [jnp.maximum(jnp.maximum(r[POOL_S * j:POOL_S * j + 1],
                                        r[POOL_S * j + 1:POOL_S * j + 2]),
                            r[POOL_S * j + 2:POOL_S * j + 3])
                for j in range(pw)]                                       # pw x (1, Nb)
        row = jnp.concatenate(cols, axis=0)                               # (pw, Nb)
        out_ref[i] = jnp.maximum(row + bias_tile, 0.0)                    # one store / row


def _pick_n_block(n_pad, h2, w2, ho, po, pw):
    """Pick the batch-lane block size.

    Caps: (a) double-buffered in+out tiles within a generation-safe ~24 MiB
    VMEM budget (v7x scoped default is 32 MiB, the smallest of all gens once
    raised), (b) acc vreg pressure ho * (nb/128) <= ~40 to avoid spills.
    Among blocks that divide n_pad and respect the caps, prefer the largest
    one that still leaves >= 2 grid steps so v7x can shard the 'parallel'
    batch axis across both TensorCores (v6e/v5e just get fewer grid steps and
    bigger contiguous DMA rows).
    """
    per_lane = 2 * (2 * 2 * C_IN * h2 * w2 * 4 + po * pw * 4)  # double-buffered B/lane
    nb_vmem = ((24 << 20) // per_lane) // LANE * LANE
    nb_vreg = (40 * LANE // max(ho, 1)) // LANE * LANE
    cap = max(LANE, min(nb_vmem, nb_vreg))
    if n_pad <= LANE:
        return n_pad  # single block; one v7x TC idles (acceptable for tiny batch)
    best = LANE
    nb = LANE
    while nb <= min(cap, n_pad // 2):
        if n_pad % nb == 0:
            best = nb
        nb += LANE
    return best
    # Note: for very large spatial sizes where ho > ~40 even at nb=128, the acc
    # would spill; splitting conv rows into per-pool-row bands (3 rows + 29%
    # recompute) is the next step — not needed at these shapes.


@jax.jit
def net1_forward(x, weight, bias):
    """x: (N, C_IN, H, W) float32 NCHW. Returns (N, 1, Po, Pw) float32."""
    n, c, h, w_dim = x.shape
    assert c == C_IN
    assert weight.shape == (C_OUT, C_IN, KH, KW) and C_OUT == 1
    assert h >= KH and w_dim >= KW
    ho = (h - KH) // SH + 1
    wo = (w_dim - KW) // SW + 1
    po = (ho - POOL_K) // POOL_S + 1
    pw = (wo - POOL_K) // POOL_S + 1

    # ---- glue: ONE fused layout pass (pad -> reshape -> transpose -> reshape)
    n_pad = ((n + LANE - 1) // LANE) * LANE      # batch -> lane multiple
    h_pad = h + (h % 2)                          # even spatial so both phases match
    w_pad = w_dim + (w_dim % 2)
    h2, w2 = h_pad // 2, w_pad // 2
    assert ho + 1 <= h2 and wo + 1 <= w2

    xpad = jnp.pad(x.astype(jnp.float32),
                   ((0, n_pad - n), (0, 0), (0, h_pad - h), (0, w_pad - w_dim)))
    # (N, C, H2, 2, W2, 2) --single transpose--> (2, 2, C, H2, W2, N)
    xp = jnp.transpose(xpad.reshape(n_pad, C_IN, h2, 2, w2, 2),
                       (3, 5, 1, 2, 4, 0)).reshape(2 * 2 * C_IN, h2, w2, n_pad)

    # Flattened filter in (kh, kw, c) order to match the kernel's tap loop.
    w_flat = jnp.transpose(weight.reshape(C_IN, KH, KW), (1, 2, 0)).reshape(-1)
    w_flat = w_flat.astype(jnp.float32)          # (KH*KW*C_IN,)
    b1 = bias.reshape(1).astype(jnp.float32)     # (1,)

    nb = _pick_n_block(n_pad, h2, w2, ho, po, pw)

    # VMEM budget: double-buffered input + output tiles, with headroom.
    tile_bytes = 2 * (2 * 2 * C_IN * h2 * w2 * nb * 4 + po * pw * nb * 4)
    vmem_limit = int(min(32 << 20, max(2 * tile_bytes, 8 << 20)))

    cost = pl.CostEstimate(
        flops=2 * KH * KW * C_IN * ho * wo * n_pad,
        transcendentals=0,
        bytes_accessed=(2 * 2 * C_IN * h2 * w2 * n_pad + po * pw * n_pad) * 4,
    )

    kernel = functools.partial(_net1_kernel, ho=ho, wo=wo, po=po, pw=pw)

    out = pl.pallas_call(
        kernel,
        out_shape=jax.ShapeDtypeStruct((po, pw, n_pad), jnp.float32),
        grid=(n_pad // nb,),
        in_specs=[
            pl.BlockSpec(memory_space=pltpu.MemorySpace.SMEM),              # weights
            pl.BlockSpec(memory_space=pltpu.MemorySpace.SMEM),              # bias
            pl.BlockSpec((2 * 2 * C_IN, h2, w2, nb), lambda b: (0, 0, 0, b)),
        ],
        out_specs=pl.BlockSpec((po, pw, nb), lambda b: (0, 0, b)),
        compiler_params=pltpu.CompilerParams(
            dimension_semantics=("parallel",),
            vmem_limit_bytes=vmem_limit),
        cost_estimate=cost,
    )(w_flat, b1, xp)

    # (Po, Pw, N_pad) -> (N, 1, Po, Pw)
    out = jnp.transpose(out, (2, 0, 1))[:n].reshape(n, C_OUT, po, pw)
    return out


def net1_reference(x, weight, bias):
    """Pure-JAX reference matching the PyTorch forward."""
    conv = jax.lax.conv_general_dilated(
        x, weight, window_strides=(SH, SW), padding="VALID",
        dimension_numbers=("NCHW", "OIHW", "NCHW"))
    conv = conv + bias.reshape(1, C_OUT, 1, 1)
    pooled = jax.lax.reduce_window(
        conv, -jnp.inf, jax.lax.max,
        window_dimensions=(1, 1, POOL_K, POOL_K),
        window_strides=(1, 1, POOL_S, POOL_S),
        padding="VALID")
    return jnp.maximum(pooled, 0.0)


if __name__ == "__main__":
    key = jax.random.PRNGKey(0)
    k_x, k_w, k_b = jax.random.split(key, 3)

    # Small deterministic example: batch=2, in_channels=2, spatial=16x16.
    x = jax.random.normal(k_x, (2, C_IN, 16, 16), dtype=jnp.float32)

    # Deterministic parameter init (PyTorch-style uniform bound; synthetic).
    fan_in = C_IN * KH * KW
    bound = 1.0 / np.sqrt(fan_in)
    weight = jax.random.uniform(
        k_w, (C_OUT, C_IN, KH, KW), jnp.float32, -bound, bound)
    bias = jax.random.uniform(k_b, (C_OUT,), jnp.float32, -bound, bound)

    out = jax.block_until_ready(net1_forward(x, weight, bias))
    ref = jax.block_until_ready(net1_reference(x, weight, bias))

    assert out.shape == (2, C_OUT, 3, 3), out.shape
    np.testing.assert_allclose(
        np.asarray(out), np.asarray(ref), rtol=1e-5, atol=1e-5)
    print("KERNEL_OK")
</pallas_src>

<mosaic_0001>
module attributes {stable_mosaic.version = 11 : i64} {
  func.func @_net1_kernel(%arg0: i32, %arg1: memref<24xf32, #tpu.memory_space<smem>>, %arg2: memref<1xf32, #tpu.memory_space<smem>>, %arg3: memref<8x8x8x128xf32, #tpu.memory_space<vmem>>, %arg4: memref<3x3x128xf32, #tpu.memory_space<vmem>>) attributes {dimension_semantics = [#tpu.dimension_semantics<parallel>], iteration_bounds = array<i64: 1>, scalar_prefetch = 0 : i64, scratch_operands = 0 : i64, tpu.core_type = #tpu.core_type<tc>, window_params = [{transform_indices = @transform_0, window_bounds = array<i64: 24>}, {transform_indices = @transform_1, window_bounds = array<i64: 1>}, {transform_indices = @transform_2, window_bounds = array<i64: 8, 8, 8, 128>}, {transform_indices = @transform_3, window_bounds = array<i64: 3, 3, 128>}]} {
    %c0 = arith.constant 0 : index
    %c0_0 = arith.constant 0 : index
    %c0_1 = arith.constant 0 : index
    %c0_2 = arith.constant 0 : index
    %0 = vector.load %arg3[%c0, %c0_0, %c0_1, %c0_2] : memref<8x8x8x128xf32, #tpu.memory_space<vmem>>, vector<1x7x8x128xf32>
    %1 = vector.shape_cast %0 : vector<1x7x8x128xf32> to vector<7x8x128xf32>
    %c2 = arith.constant 2 : index
    %c0_3 = arith.constant 0 : index
    %c0_4 = arith.constant 0 : index
    %c0_5 = arith.constant 0 : index
    %2 = vector.load %arg3[%c2, %c0_3, %c0_4, %c0_5] : memref<8x8x8x128xf32, #tpu.memory_space<vmem>>, vector<1x7x7x128xf32>
    %3 = vector.shape_cast %2 : vector<1x7x7x128xf32> to vector<7x7x128xf32>
    %c0_6 = arith.constant 0 : index
    %4 = memref.load %arg1[%c0_6] : memref<24xf32, #tpu.memory_space<smem>>
    %c2_7 = arith.constant 2 : index
    %5 = memref.load %arg1[%c2_7] : memref<24xf32, #tpu.memory_space<smem>>
    %c4 = arith.constant 4 : index
    %6 = memref.load %arg1[%c4] : memref<24xf32, #tpu.memory_space<smem>>
    %7 = vector.extract_strided_slice %1 {offsets = [0, 0, 0], sizes = [7, 7, 128], strides = [1, 1, 1]} : vector<7x8x128xf32> to vector<7x7x128xf32>
    %8 = vector.broadcast %4 : f32 to vector<7x7x128xf32>
    %9 = arith.mulf %7, %8 : vector<7x7x128xf32>
    %10 = vector.broadcast %5 : f32 to vector<7x7x128xf32>
    %11 = arith.mulf %3, %10 : vector<7x7x128xf32>
    %12 = arith.addf %9, %11 : vector<7x7x128xf32>
    %13 = vector.extract_strided_slice %1 {offsets = [0, 1, 0], sizes = [7, 7, 128], strides = [1, 1, 1]} : vector<7x8x128xf32> to vector<7x7x128xf32>
    %14 = vector.broadcast %6 : f32 to vector<7x7x128xf32>
    %15 = arith.mulf %13, %14 : vector<7x7x128xf32>
    %16 = arith.addf %12, %15 : vector<7x7x128xf32>
    %c1 = arith.constant 1 : index
    %c0_8 = arith.constant 0 : index
    %c0_9 = arith.constant 0 : index
    %c0_10 = arith.constant 0 : index
    %17 = vector.load %arg3[%c1, %c0_8, %c0_9, %c0_10] : memref<8x8x8x128xf32, #tpu.memory_space<vmem>>, vector<1x7x8x128xf32>
    %18 = vector.shape_cast %17 : vector<1x7x8x128xf32> to vector<7x8x128xf32>
    %c3 = arith.constant 3 : index
    %c0_11 = arith.constant 0 : index
    %c0_12 = arith.constant 0 : index
    %c0_13 = arith.constant 0 : index
    %19 = vector.load %arg3[%c3, %c0_11, %c0_12, %c0_13] : memref<8x8x8x128xf32, #tpu.memory_space<vmem>>, vector<1x7x7x128xf32>
    %20 = vector.shape_cast %19 : vector<1x7x7x128xf32> to vector<7x7x128xf32>
    %c1_14 = arith.constant 1 : index
    %21 = memref.load %arg1[%c1_14] : memref<24xf32, #tpu.memory_space<smem>>
    %c3_15 = arith.constant 3 : index
    %22 = memref.load %arg1[%c3_15] : memref<24xf32, #tpu.memory_space<smem>>
    %c5 = arith.constant 5 : index
    %23 = memref.load %arg1[%c5] : memref<24xf32, #tpu.memory_space<smem>>
    %24 = vector.extract_strided_slice %18 {offsets = [0, 0, 0], sizes = [7, 7, 128], strides = [1, 1, 1]} : vector<7x8x128xf32> to vector<7x7x128xf32>
    %25 = vector.broadcast %21 : f32 to vector<7x7x128xf32>
    %26 = arith.mulf %24, %25 : vector<7x7x128xf32>
    %27 = vector.broadcast %22 : f32 to vector<7x7x128xf32>
    %28 = arith.mulf %20, %27 : vector<7x7x128xf32>
    %29 = arith.addf %26, %28 : vector<7x7x128xf32>
    %30 = vector.extract_strided_slice %18 {offsets = [0, 1, 0], sizes = [7, 7, 128], strides = [1, 1, 1]} : vector<7x8x128xf32> to vector<7x7x128xf32>
    %31 = vector.broadcast %23 : f32 to vector<7x7x128xf32>
    %32 = arith.mulf %30, %31 : vector<7x7x128xf32>
    %33 = arith.addf %29, %32 : vector<7x7x128xf32>
    %34 = arith.addf %16, %33 : vector<7x7x128xf32>
    %c4_16 = arith.constant 4 : index
    %c0_17 = arith.constant 0 : index
    %c0_18 = arith.constant 0 : index
    %c0_19 = arith.constant 0 : index
    %35 = vector.load %arg3[%c4_16, %c0_17, %c0_18, %c0_19] : memref<8x8x8x128xf32, #tpu.memory_space<vmem>>, vector<1x7x8x128xf32>
    %36 = vector.shape_cast %35 : vector<1x7x8x128xf32> to vector<7x8x128xf32>
    %c6 = arith.constant 6 : index
    %c0_20 = arith.constant 0 : index
    %c0_21 = arith.constant 0 : index
    %c0_22 = arith.constant 0 : index
    %37 = vector.load %arg3[%c6, %c0_20, %c0_21, %c0_22] : memref<8x8x8x128xf32, #tpu.memory_space<vmem>>, vector<1x7x7x128xf32>
    %38 = vector.shape_cast %37 : vector<1x7x7x128xf32> to vector<7x7x128xf32>
    %c6_23 = arith.constant 6 : index
    %39 = memref.load %arg1[%c6_23] : memref<24xf32, #tpu.memory_space<smem>>
    %c8 = arith.constant 8 : index
    %40 = memref.load %arg1[%c8] : memref<24xf32, #tpu.memory_space<smem>>
    %c10 = arith.constant 10 : index
    %41 = memref.load %arg1[%c10] : memref<24xf32, #tpu.memory_space<smem>>
    %42 = vector.extract_strided_slice %36 {offsets = [0, 0, 0], sizes = [7, 7, 128], strides = [1, 1, 1]} : vector<7x8x128xf32> to vector<7x7x128xf32>
    %43 = vector.broadcast %39 : f32 to vector<7x7x128xf32>
    %44 = arith.mulf %42, %43 : vector<7x7x128xf32>
    %45 = vector.broadcast %40 : f32 to vector<7x7x128xf32>
    %46 = arith.mulf %38, %45 : vector<7x7x128xf32>
    %47 = arith.addf %44, %46 : vector<7x7x128xf32>
    %48 = vector.extract_strided_slice %36 {offsets = [0, 1, 0], sizes = [7, 7, 128], strides = [1, 1, 1]} : vector<7x8x128xf32> to vector<7x7x128xf32>
    %49 = vector.broadcast %41 : f32 to vector<7x7x128xf32>
    %50 = arith.mulf %48, %49 : vector<7x7x128xf32>
    %51 = arith.addf %47, %50 : vector<7x7x128xf32>
    %52 = arith.addf %34, %51 : vector<7x7x128xf32>
    %c5_24 = arith.constant 5 : index
    %c0_25 = arith.constant 0 : index
    %c0_26 = arith.constant 0 : index
    %c0_27 = arith.constant 0 : index
    %53 = vector.load %arg3[%c5_24, %c0_25, %c0_26, %c0_27] : memref<8x8x8x128xf32, #tpu.memory_space<vmem>>, vector<1x7x8x128xf32>
    %54 = vector.shape_cast %53 : vector<1x7x8x128xf32> to vector<7x8x128xf32>
    %c7 = arith.constant 7 : index
    %c0_28 = arith.constant 0 : index
    %c0_29 = arith.constant 0 : index
    %c0_30 = arith.constant 0 : index
    %55 = vector.load %arg3[%c7, %c0_28, %c0_29, %c0_30] : memref<8x8x8x128xf32, #tpu.memory_space<vmem>>, vector<1x7x7x128xf32>
    %56 = vector.shape_cast %55 : vector<1x7x7x128xf32> to vector<7x7x128xf32>
    %c7_31 = arith.constant 7 : index
    %57 = memref.load %arg1[%c7_31] : memref<24xf32, #tpu.memory_space<smem>>
    %c9 = arith.constant 9 : index
    %58 = memref.load %arg1[%c9] : memref<24xf32, #tpu.memory_space<smem>>
    %c11 = arith.constant 11 : index
    %59 = memref.load %arg1[%c11] : memref<24xf32, #tpu.memory_space<smem>>
    %60 = vector.extract_strided_slice %54 {offsets = [0, 0, 0], sizes = [7, 7, 128], strides = [1, 1, 1]} : vector<7x8x128xf32> to vector<7x7x128xf32>
    %61 = vector.broadcast %57 : f32 to vector<7x7x128xf32>
    %62 = arith.mulf %60, %61 : vector<7x7x128xf32>
    %63 = vector.broadcast %58 : f32 to vector<7x7x128xf32>
    %64 = arith.mulf %56, %63 : vector<7x7x128xf32>
    %65 = arith.addf %62, %64 : vector<7x7x128xf32>
    %66 = vector.extract_strided_slice %54 {offsets = [0, 1, 0], sizes = [7, 7, 128], strides = [1, 1, 1]} : vector<7x8x128xf32> to vector<7x7x128xf32>
    %67 = vector.broadcast %59 : f32 to vector<7x7x128xf32>
    %68 = arith.mulf %66, %67 : vector<7x7x128xf32>
    %69 = arith.addf %65, %68 : vector<7x7x128xf32>
    %70 = arith.addf %52, %69 : vector<7x7x128xf32>
    %c0_32 = arith.constant 0 : index
    %c1_33 = arith.constant 1 : index
    %c0_34 = arith.constant 0 : index
    %c0_35 = arith.constant 0 : index
    %71 = vector.load %arg3[%c0_32, %c1_33, %c0_34, %c0_35] : memref<8x8x8x128xf32, #tpu.memory_space<vmem>>, vector<1x7x8x128xf32>
    %72 = vector.shape_cast %71 : vector<1x7x8x128xf32> to vector<7x8x128xf32>
    %c2_36 = arith.constant 2 : index
    %c1_37 = arith.constant 1 : index
    %c0_38 = arith.constant 0 : index
    %c0_39 = arith.constant 0 : index
    %73 = vector.load %arg3[%c2_36, %c1_37, %c0_38, %c0_39] : memref<8x8x8x128xf32, #tpu.memory_space<vmem>>, vector<1x7x7x128xf32>
    %74 = vector.shape_cast %73 : vector<1x7x7x128xf32> to vector<7x7x128xf32>
    %c12 = arith.constant 12 : index
    %75 = memref.load %arg1[%c12] : memref<24xf32, #tpu.memory_space<smem>>
    %c14 = arith.constant 14 : index
    %76 = memref.load %arg1[%c14] : memref<24xf32, #tpu.memory_space<smem>>
    %c16 = arith.constant 16 : index
    %77 = memref.load %arg1[%c16] : memref<24xf32, #tpu.memory_space<smem>>
    %78 = vector.extract_strided_slice %72 {offsets = [0, 0, 0], sizes = [7, 7, 128], strides = [1, 1, 1]} : vector<7x8x128xf32> to vector<7x7x128xf32>
    %79 = vector.broadcast %75 : f32 to vector<7x7x128xf32>
    %80 = arith.mulf %78, %79 : vector<7x7x128xf32>
    %81 = vector.broadcast %76 : f32 to vector<7x7x128xf32>
    %82 = arith.mulf %74, %81 : vector<7x7x128xf32>
    %83 = arith.addf %80, %82 : vector<7x7x128xf32>
    %84 = vector.extract_strided_slice %72 {offsets = [0, 1, 0], sizes = [7, 7, 128], strides = [1, 1, 1]} : vector<7x8x128xf32> to vector<7x7x128xf32>
    %85 = vector.broadcast %77 : f32 to vector<7x7x128xf32>
    %86 = arith.mulf %84, %85 : vector<7x7x128xf32>
    %87 = arith.addf %83, %86 : vector<7x7x128xf32>
    %88 = arith.addf %70, %87 : vector<7x7x128xf32>
    %c1_40 = arith.constant 1 : index
    %c1_41 = arith.constant 1 : index
    %c0_42 = arith.constant 0 : index
    %c0_43 = arith.constant 0 : index
    %89 = vector.load %arg3[%c1_40, %c1_41, %c0_42, %c0_43] : memref<8x8x8x128xf32, #tpu.memory_space<vmem>>, vector<1x7x8x128xf32>
    %90 = vector.shape_cast %89 : vector<1x7x8x128xf32> to vector<7x8x128xf32>
    %c3_44 = arith.constant 3 : index
    %c1_45 = arith.constant 1 : index
    %c0_46 = arith.constant 0 : index
    %c0_47 = arith.constant 0 : index
    %91 = vector.load %arg3[%c3_44, %c1_45, %c0_46, %c0_47] : memref<8x8x8x128xf32, #tpu.memory_space<vmem>>, vector<1x7x7x128xf32>
    %92 = vector.shape_cast %91 : vector<1x7x7x128xf32> to vector<7x7x128xf32>
    %c13 = arith.constant 13 : index
    %93 = memref.load %arg1[%c13] : memref<24xf32, #tpu.memory_space<smem>>
    %c15 = arith.constant 15 : index
    %94 = memref.load %arg1[%c15] : memref<24xf32, #tpu.memory_space<smem>>
    %c17 = arith.constant 17 : index
    %95 = memref.load %arg1[%c17] : memref<24xf32, #tpu.memory_space<smem>>
    %96 = vector.extract_strided_slice %90 {offsets = [0, 0, 0], sizes = [7, 7, 128], strides = [1, 1, 1]} : vector<7x8x128xf32> to vector<7x7x128xf32>
    %97 = vector.broadcast %93 : f32 to vector<7x7x128xf32>
    %98 = arith.mulf %96, %97 : vector<7x7x128xf32>
    %99 = vector.broadcast %94 : f32 to vector<7x7x128xf32>
    %100 = arith.mulf %92, %99 : vector<7x7x128xf32>
    %101 = arith.addf %98, %100 : vector<7x7x128xf32>
    %102 = vector.extract_strided_slice %90 {offsets = [0, 1, 0], sizes = [7, 7, 128], strides = [1, 1, 1]} : vector<7x8x128xf32> to vector<7x7x128xf32>
    %103 = vector.broadcast %95 : f32 to vector<7x7x128xf32>
    %104 = arith.mulf %102, %103 : vector<7x7x128xf32>
    %105 = arith.addf %101, %104 : vector<7x7x128xf32>
    %106 = arith.addf %88, %105 : vector<7x7x128xf32>
    %c4_48 = arith.constant 4 : index
    %c1_49 = arith.constant 1 : index
    %c0_50 = arith.constant 0 : index
    %c0_51 = arith.constant 0 : index
    %107 = vector.load %arg3[%c4_48, %c1_49, %c0_50, %c0_51] : memref<8x8x8x128xf32, #tpu.memory_space<vmem>>, vector<1x7x8x128xf32>
    %108 = vector.shape_cast %107 : vector<1x7x8x128xf32> to vector<7x8x128xf32>
    %c6_52 = arith.constant 6 : index
    %c1_53 = arith.constant 1 : index
    %c0_54 = arith.constant 0 : index
    %c0_55 = arith.constant 0 : index
    %109 = vector.load %arg3[%c6_52, %c1_53, %c0_54, %c0_55] : memref<8x8x8x128xf32, #tpu.memory_space<vmem>>, vector<1x7x7x128xf32>
    %110 = vector.shape_cast %109 : vector<1x7x7x128xf32> to vector<7x7x128xf32>
    %c18 = arith.constant 18 : index
    %111 = memref.load %arg1[%c18] : memref<24xf32, #tpu.memory_space<smem>>
    %c20 = arith.constant 20 : index
    %112 = memref.load %arg1[%c20] : memref<24xf32, #tpu.memory_space<smem>>
    %c22 = arith.constant 22 : index
    %113 = memref.load %arg1[%c22] : memref<24xf32, #tpu.memory_space<smem>>
    %114 = vector.extract_strided_slice %108 {offsets = [0, 0, 0], sizes = [7, 7, 128], strides = [1, 1, 1]} : vector<7x8x128xf32> to vector<7x7x128xf32>
    %115 = vector.broadcast %111 : f32 to vector<7x7x128xf32>
    %116 = arith.mulf %114, %115 : vector<7x7x128xf32>
    %117 = vector.broadcast %112 : f32 to vector<7x7x128xf32>
    %118 = arith.mulf %110, %117 : vector<7x7x128xf32>
    %119 = arith.addf %116, %118 : vector<7x7x128xf32>
    %120 = vector.extract_strided_slice %108 {offsets = [0, 1, 0], sizes = [7, 7, 128], strides = [1, 1, 1]} : vector<7x8x128xf32> to vector<7x7x128xf32>
    %121 = vector.broadcast %113 : f32 to vector<7x7x128xf32>
    %122 = arith.mulf %120, %121 : vector<7x7x128xf32>
    %123 = arith.addf %119, %122 : vector<7x7x128xf32>
    %124 = arith.addf %106, %123 : vector<7x7x128xf32>
    %c5_56 = arith.constant 5 : index
    %c1_57 = arith.constant 1 : index
    %c0_58 = arith.constant 0 : index
    %c0_59 = arith.constant 0 : index
    %125 = vector.load %arg3[%c5_56, %c1_57, %c0_58, %c0_59] : memref<8x8x8x128xf32, #tpu.memory_space<vmem>>, vector<1x7x8x128xf32>
    %126 = vector.shape_cast %125 : vector<1x7x8x128xf32> to vector<7x8x128xf32>
    %c7_60 = arith.constant 7 : index
    %c1_61 = arith.constant 1 : index
    %c0_62 = arith.constant 0 : index
    %c0_63 = arith.constant 0 : index
    %127 = vector.load %arg3[%c7_60, %c1_61, %c0_62, %c0_63] : memref<8x8x8x128xf32, #tpu.memory_space<vmem>>, vector<1x7x7x128xf32>
    %128 = vector.shape_cast %127 : vector<1x7x7x128xf32> to vector<7x7x128xf32>
    %c19 = arith.constant 19 : index
    %129 = memref.load %arg1[%c19] : memref<24xf32, #tpu.memory_space<smem>>
    %c21 = arith.constant 21 : index
    %130 = memref.load %arg1[%c21] : memref<24xf32, #tpu.memory_space<smem>>
    %c23 = arith.constant 23 : index
    %131 = memref.load %arg1[%c23] : memref<24xf32, #tpu.memory_space<smem>>
    %132 = vector.extract_strided_slice %126 {offsets = [0, 0, 0], sizes = [7, 7, 128], strides = [1, 1, 1]} : vector<7x8x128xf32> to vector<7x7x128xf32>
    %133 = vector.broadcast %129 : f32 to vector<7x7x128xf32>
    %134 = arith.mulf %132, %133 : vector<7x7x128xf32>
    %135 = vector.broadcast %130 : f32 to vector<7x7x128xf32>
    %136 = arith.mulf %128, %135 : vector<7x7x128xf32>
    %137 = arith.addf %134, %136 : vector<7x7x128xf32>
    %138 = vector.extract_strided_slice %126 {offsets = [0, 1, 0], sizes = [7, 7, 128], strides = [1, 1, 1]} : vector<7x8x128xf32> to vector<7x7x128xf32>
    %139 = vector.broadcast %131 : f32 to vector<7x7x128xf32>
    %140 = arith.mulf %138, %139 : vector<7x7x128xf32>
    %141 = arith.addf %137, %140 : vector<7x7x128xf32>
    %142 = arith.addf %124, %141 : vector<7x7x128xf32>
    %c0_64 = arith.constant 0 : index
    %143 = memref.load %arg2[%c0_64] : memref<1xf32, #tpu.memory_space<smem>>
    %144 = vector.broadcast %143 : f32 to vector<3x128xf32>
    %145 = vector.extract_strided_slice %142 {offsets = [0, 0, 0], sizes = [1, 7, 128], strides = [1, 1, 1]} : vector<7x7x128xf32> to vector<1x7x128xf32>
    %146 = vector.shape_cast %145 : vector<1x7x128xf32> to vector<7x128xf32>
    %147 = vector.extract_strided_slice %142 {offsets = [1, 0, 0], sizes = [1, 7, 128], strides = [1, 1, 1]} : vector<7x7x128xf32> to vector<1x7x128xf32>
    %148 = vector.shape_cast %147 : vector<1x7x128xf32> to vector<7x128xf32>
    %149 = arith.maximumf %146, %148 : vector<7x128xf32>
    %150 = vector.extract_strided_slice %142 {offsets = [2, 0, 0], sizes = [1, 7, 128], strides = [1, 1, 1]} : vector<7x7x128xf32> to vector<1x7x128xf32>
    %151 = vector.shape_cast %150 : vector<1x7x128xf32> to vector<7x128xf32>
    %152 = arith.maximumf %149, %151 : vector<7x128xf32>
    %153 = vector.extract_strided_slice %152 {offsets = [0, 0], sizes = [1, 128], strides = [1, 1]} : vector<7x128xf32> to vector<1x128xf32>
    %154 = vector.extract_strided_slice %152 {offsets = [1, 0], sizes = [1, 128], strides = [1, 1]} : vector<7x128xf32> to vector<1x128xf32>
    %155 = arith.maximumf %153, %154 : vector<1x128xf32>
    %156 = vector.extract_strided_slice %152 {offsets = [2, 0], sizes = [1, 128], strides = [1, 1]} : vector<7x128xf32> to vector<1x128xf32>
    %157 = arith.maximumf %155, %156 : vector<1x128xf32>
    %158 = vector.extract_strided_slice %152 {offsets = [2, 0], sizes = [1, 128], strides = [1, 1]} : vector<7x128xf32> to vector<1x128xf32>
    %159 = vector.extract_strided_slice %152 {offsets = [3, 0], sizes = [1, 128], strides = [1, 1]} : vector<7x128xf32> to vector<1x128xf32>
    %160 = arith.maximumf %158, %159 : vector<1x128xf32>
    %161 = vector.extract_strided_slice %152 {offsets = [4, 0], sizes = [1, 128], strides = [1, 1]} : vector<7x128xf32> to vector<1x128xf32>
    %162 = arith.maximumf %160, %161 : vector<1x128xf32>
    %163 = vector.extract_strided_slice %152 {offsets = [4, 0], sizes = [1, 128], strides = [1, 1]} : vector<7x128xf32> to vector<1x128xf32>
    %164 = vector.extract_strided_slice %152 {offsets = [5, 0], sizes = [1, 128], strides = [1, 1]} : vector<7x128xf32> to vector<1x128xf32>
    %165 = arith.maximumf %163, %164 : vector<1x128xf32>
    %166 = vector.extract_strided_slice %152 {offsets = [6, 0], sizes = [1, 128], strides = [1, 1]} : vector<7x128xf32> to vector<1x128xf32>
    %167 = arith.maximumf %165, %166 : vector<1x128xf32>
    %168 = tpu.concatenate %157, %162, %167 in 0 : vector<1x128xf32>, vector<1x128xf32>, vector<1x128xf32> -> vector<3x128xf32>
    %169 = arith.addf %168, %144 : vector<3x128xf32>
    %cst = arith.constant 0.000000e+00 : f32
    %170 = vector.broadcast %cst : f32 to vector<3x128xf32>
    %171 = arith.maximumf %169, %170 : vector<3x128xf32>
    %c0_65 = arith.constant 0 : index
    %c0_66 = arith.constant 0 : index
    %c0_67 = arith.constant 0 : index
    %172 = vector.load %arg4[%c0_65, %c0_66, %c0_67] : memref<3x3x128xf32, #tpu.memory_space<vmem>>, vector<1x3x128xf32>
    %173 = vector.shape_cast %172 : vector<1x3x128xf32> to vector<3x128xf32>
    %174 = vector.shape_cast %171 : vector<3x128xf32> to vector<1x3x128xf32>
    tpu.vector_store %arg4[%c0_65, %c0_66, %c0_67], %174 {strides = array<i32>} : memref<3x3x128xf32, #tpu.memory_space<vmem>>, vector<1x3x128xf32>,
    %175 = vector.extract_strided_slice %142 {offsets = [2, 0, 0], sizes = [1, 7, 128], strides = [1, 1, 1]} : vector<7x7x128xf32> to vector<1x7x128xf32>
    %176 = vector.shape_cast %175 : vector<1x7x128xf32> to vector<7x128xf32>
    %177 = vector.extract_strided_slice %142 {offsets = [3, 0, 0], sizes = [1, 7, 128], strides = [1, 1, 1]} : vector<7x7x128xf32> to vector<1x7x128xf32>
    %178 = vector.shape_cast %177 : vector<1x7x128xf32> to vector<7x128xf32>
    %179 = arith.maximumf %176, %178 : vector<7x128xf32>
    %180 = vector.extract_strided_slice %142 {offsets = [4, 0, 0], sizes = [1, 7, 128], strides = [1, 1, 1]} : vector<7x7x128xf32> to vector<1x7x128xf32>
    %181 = vector.shape_cast %180 : vector<1x7x128xf32> to vector<7x128xf32>
    %182 = arith.maximumf %179, %181 : vector<7x128xf32>
    %183 = vector.extract_strided_slice %182 {offsets = [0, 0], sizes = [1, 128], strides = [1, 1]} : vector<7x128xf32> to vector<1x128xf32>
    %184 = vector.extract_strided_slice %182 {offsets = [1, 0], sizes = [1, 128], strides = [1, 1]} : vector<7x128xf32> to vector<1x128xf32>
    %185 = arith.maximumf %183, %184 : vector<1x128xf32>
    %186 = vector.extract_strided_slice %182 {offsets = [2, 0], sizes = [1, 128], strides = [1, 1]} : vector<7x128xf32> to vector<1x128xf32>
    %187 = arith.maximumf %185, %186 : vector<1x128xf32>
    %188 = vector.extract_strided_slice %182 {offsets = [2, 0], sizes = [1, 128], strides = [1, 1]} : vector<7x128xf32> to vector<1x128xf32>
    %189 = vector.extract_strided_slice %182 {offsets = [3, 0], sizes = [1, 128], strides = [1, 1]} : vector<7x128xf32> to vector<1x128xf32>
    %190 = arith.maximumf %188, %189 : vector<1x128xf32>
    %191 = vector.extract_strided_slice %182 {offsets = [4, 0], sizes = [1, 128], strides = [1, 1]} : vector<7x128xf32> to vector<1x128xf32>
    %192 = arith.maximumf %190, %191 : vector<1x128xf32>
    %193 = vector.extract_strided_slice %182 {offsets = [4, 0], sizes = [1, 128], strides = [1, 1]} : vector<7x128xf32> to vector<1x128xf32>
    %194 = vector.extract_strided_slice %182 {offsets = [5, 0], sizes = [1, 128], strides = [1, 1]} : vector<7x128xf32> to vector<1x128xf32>
    %195 = arith.maximumf %193, %194 : vector<1x128xf32>
    %196 = vector.extract_strided_slice %182 {offsets = [6, 0], sizes = [1, 128], strides = [1, 1]} : vector<7x128xf32> to vector<1x128xf32>
    %197 = arith.maximumf %195, %196 : vector<1x128xf32>
    %198 = tpu.concatenate %187, %192, %197 in 0 : vector<1x128xf32>, vector<1x128xf32>, vector<1x128xf32> -> vector<3x128xf32>
    %199 = arith.addf %198, %144 : vector<3x128xf32>
    %cst_68 = arith.constant 0.000000e+00 : f32
    %200 = vector.broadcast %cst_68 : f32 to vector<3x128xf32>
    %201 = arith.maximumf %199, %200 : vector<3x128xf32>
    %c1_69 = arith.constant 1 : index
    %c0_70 = arith.constant 0 : index
    %c0_71 = arith.constant 0 : index
    %202 = vector.load %arg4[%c1_69, %c0_70, %c0_71] : memref<3x3x128xf32, #tpu.memory_space<vmem>>, vector<1x3x128xf32>
    %203 = vector.shape_cast %202 : vector<1x3x128xf32> to vector<3x128xf32>
    %204 = vector.shape_cast %201 : vector<3x128xf32> to vector<1x3x128xf32>
    tpu.vector_store %arg4[%c1_69, %c0_70, %c0_71], %204 {strides = array<i32>} : memref<3x3x128xf32, #tpu.memory_space<vmem>>, vector<1x3x128xf32>,
    %205 = vector.extract_strided_slice %142 {offsets = [4, 0, 0], sizes = [1, 7, 128], strides = [1, 1, 1]} : vector<7x7x128xf32> to vector<1x7x128xf32>
    %206 = vector.shape_cast %205 : vector<1x7x128xf32> to vector<7x128xf32>
    %207 = vector.extract_strided_slice %142 {offsets = [5, 0, 0], sizes = [1, 7, 128], strides = [1, 1, 1]} : vector<7x7x128xf32> to vector<1x7x128xf32>
    %208 = vector.shape_cast %207 : vector<1x7x128xf32> to vector<7x128xf32>
    %209 = arith.maximumf %206, %208 : vector<7x128xf32>
    %210 = vector.extract_strided_slice %142 {offsets = [6, 0, 0], sizes = [1, 7, 128], strides = [1, 1, 1]} : vector<7x7x128xf32> to vector<1x7x128xf32>
    %211 = vector.shape_cast %210 : vector<1x7x128xf32> to vector<7x128xf32>
    %212 = arith.maximumf %209, %211 : vector<7x128xf32>
    %213 = vector.extract_strided_slice %212 {offsets = [0, 0], sizes = [1, 128], strides = [1, 1]} : vector<7x128xf32> to vector<1x128xf32>
    %214 = vector.extract_strided_slice %212 {offsets = [1, 0], sizes = [1, 128], strides = [1, 1]} : vector<7x128xf32> to vector<1x128xf32>
    %215 = arith.maximumf %213, %214 : vector<1x128xf32>
    %216 = vector.extract_strided_slice %212 {offsets = [2, 0], sizes = [1, 128], strides = [1, 1]} : vector<7x128xf32> to vector<1x128xf32>
    %217 = arith.maximumf %215, %216 : vector<1x128xf32>
    %218 = vector.extract_strided_slice %212 {offsets = [2, 0], sizes = [1, 128], strides = [1, 1]} : vector<7x128xf32> to vector<1x128xf32>
    %219 = vector.extract_strided_slice %212 {offsets = [3, 0], sizes = [1, 128], strides = [1, 1]} : vector<7x128xf32> to vector<1x128xf32>
    %220 = arith.maximumf %218, %219 : vector<1x128xf32>
    %221 = vector.extract_strided_slice %212 {offsets = [4, 0], sizes = [1, 128], strides = [1, 1]} : vector<7x128xf32> to vector<1x128xf32>
    %222 = arith.maximumf %220, %221 : vector<1x128xf32>
    %223 = vector.extract_strided_slice %212 {offsets = [4, 0], sizes = [1, 128], strides = [1, 1]} : vector<7x128xf32> to vector<1x128xf32>
    %224 = vector.extract_strided_slice %212 {offsets = [5, 0], sizes = [1, 128], strides = [1, 1]} : vector<7x128xf32> to vector<1x128xf32>
    %225 = arith.maximumf %223, %224 : vector<1x128xf32>
    %226 = vector.extract_strided_slice %212 {offsets = [6, 0], sizes = [1, 128], strides = [1, 1]} : vector<7x128xf32> to vector<1x128xf32>
    %227 = arith.maximumf %225, %226 : vector<1x128xf32>
    %228 = tpu.concatenate %217, %222, %227 in 0 : vector<1x128xf32>, vector<1x128xf32>, vector<1x128xf32> -> vector<3x128xf32>
    %229 = arith.addf %228, %144 : vector<3x128xf32>
    %cst_72 = arith.constant 0.000000e+00 : f32
    %230 = vector.broadcast %cst_72 : f32 to vector<3x128xf32>
    %231 = arith.maximumf %229, %230 : vector<3x128xf32>
    %c2_73 = arith.constant 2 : index
    %c0_74 = arith.constant 0 : index
    %c0_75 = arith.constant 0 : index
    %232 = vector.load %arg4[%c2_73, %c0_74, %c0_75] : memref<3x3x128xf32, #tpu.memory_space<vmem>>, vector<1x3x128xf32>
    %233 = vector.shape_cast %232 : vector<1x3x128xf32> to vector<3x128xf32>
    %234 = vector.shape_cast %231 : vector<3x128xf32> to vector<1x3x128xf32>
    tpu.vector_store %arg4[%c2_73, %c0_74, %c0_75], %234 {strides = array<i32>} : memref<3x3x128xf32, #tpu.memory_space<vmem>>, vector<1x3x128xf32>,
    return
  }
  func.func @transform_0(%arg0: i32) -> i32 {
    %c0_i32 = arith.constant 0 : i32
    %c0_i32_0 = arith.constant 0 : i32
    return %c0_i32 : i32
  }
  func.func @transform_1(%arg0: i32) -> i32 {
    %c0_i32 = arith.constant 0 : i32
    %c0_i32_0 = arith.constant 0 : i32
    return %c0_i32 : i32
  }
  func.func @transform_2(%arg0: i32) -> (i32, i32, i32, i32) {
    %c0_i32 = arith.constant 0 : i32
    %c0_i32_0 = arith.constant 0 : i32
    %c0_i32_1 = arith.constant 0 : i32
    %c0_i32_2 = arith.constant 0 : i32
    return %c0_i32, %c0_i32_0, %c0_i32_1, %arg0 : i32, i32, i32, i32
  }
  func.func @transform_3(%arg0: i32) -> (i32, i32, i32) {
    %c0_i32 = arith.constant 0 : i32
    %c0_i32_0 = arith.constant 0 : i32
    %c0_i32_1 = arith.constant 0 : i32
    return %c0_i32, %c0_i32_0, %arg0 : i32, i32, i32
  }
}

</mosaic_0001>

<llo_original>
// kernel: net1_forward.1
$region0: #{net1_forward.1}
  #allocation0 [shape = 'u32[]', space=smem, size = 0x4, offset = 0x4, fixed_abs, tag = 'smem constant byte address 0x4 - core index']
  #allocation1 [shape = 'u32[144,128]{1,0:T(1,128)}', space=vmem, size = 0x12000, scoped, tag = 'internal scratch']
  #allocation2 [shape = 'f32[1]{0:T(128)S(6)}', space=smem, size = 0x200, scoped, tag = 'scoped memory for net1_forward.1']
  %s0 = inlined_call_operand.vmem [shape: f32[24], index: 0, kind: input, shape index: {}]
  %s1 = inlined_call_operand.<no memory space> [shape: f32[1], index: 1, kind: input, shape index: {}]
  %s2 = inlined_call_operand.vmem [shape: f32[8,8,8,128], index: 2, kind: input, shape index: {}]
  %s3 = inlined_call_operand.vmem [shape: f32[3,3,128], index: 3, kind: output, shape index: {}]
  %s4 = sld [smem:[#allocation0]]
  $region26: #{net1_forward.1} parent=0
    _
  %s6 = ssub.s32 1, %s4
  %s7 = scalar_select 0, %s6, %s4
  %8 = sst [smem:[#allocation2]] %s1
  $region1: #{net1_forward.1} parent=0
    #allocation3 [shape = 'u8[512]{0}', space=smem, size = 0x200, scoped, tag = 'input window, operand 0, single buffered']
    #allocation4 [shape = 's32[1]{0}', space=sflag, size = 0x4, scoped, tag = 'scoped memory for net1_forward.1']
    %9 = vsyncpa [#allocation4], 0
    // Predicated region
    $region2: #{net1_forward.1} parent=1 // pred_check
      _
    $region3: #{net1_forward.1} parent=1 // pred_check_branch
      %11 = sbr.rel (0) target = $region5
    $region4: #{net1_forward.1} parent=1 // pred_region
      %s13 = ssub.s32 16, 16
      %14 = vsyncadd [#allocation4], %s13
      %s16 = sshll.u32 %s0, 4
      %s17 = int_to_ptr.vmem [resolvable:$true] %s16
      %19 = dma.vmem_to_smem %s17, 16, [#allocation3], [#allocation4]
    $region5: #{net1_forward.1} parent=1 // pred_fallthru
      _
    // Predicated region
    $region6: #{net1_forward.1} parent=1 // pred_check
      _
    $region7: #{net1_forward.1} parent=1 // pred_check_branch
      %21 = sbr.rel (0) target = $region9
    $region8: #{net1_forward.1} parent=1 // pred_region
      _
    $region9: #{net1_forward.1} parent=1 // pred_fallthru
      _
    // Predicated region
    $region10: #{net1_forward.1} parent=1 // pred_check
      _
    $region11: #{net1_forward.1} parent=1 // pred_check_branch
      %23 = sbr.rel (0) target = $region13
    $region12: #{net1_forward.1} parent=1 // pred_region
      _
    $region13: #{net1_forward.1} parent=1 // pred_fallthru
      _
    // Predicated region
    $region14: #{net1_forward.1} parent=1 // pred_check
      _
    $region15: #{net1_forward.1} parent=1 // pred_check_branch
      %25 = sbr.rel (0) target = $region17
    $region16: #{net1_forward.1} parent=1 // pred_region
      %26 = dma.done [#allocation4], 16
    $region17: #{net1_forward.1} parent=1 // pred_fallthru
      _
    %27 = sfence
    %v28 = vld [vmem:[%s2] sm:$0xff]
    %v29 = vld [vmem:[%s2 + $0x8] sm:$0xff]
    %v30 = vld [vmem:[%s2 + $0x10] sm:$0xff]
    %v31 = vld [vmem:[%s2 + $0x18] sm:$0xff]
    %v32 = vld [vmem:[%s2 + $0x20] sm:$0xff]
    %v33 = vld [vmem:[%s2 + $0x28] sm:$0xff]
    %v34 = vld [vmem:[%s2 + $0x30] sm:$0xff]
    %s35 = scalar_lea.vmem %s2, 128
    %v36 = vld [vmem:[%s35] sm:$0x7f]
    %v37 = vld [vmem:[%s35 + $0x8] sm:$0x7f]
    %v38 = vld [vmem:[%s35 + $0x10] sm:$0x7f]
    %v39 = vld [vmem:[%s35 + $0x18] sm:$0x7f]
    %v40 = vld [vmem:[%s35 + $0x20] sm:$0x7f]
    %v41 = vld [vmem:[%s35 + $0x28] sm:$0x7f]
    %v42 = vld [vmem:[%s35 + $0x30] sm:$0x7f]
    %s43 = sld [smem:[#allocation3]]
    %s44 = sld [smem:[#allocation3 + $0x2]]
    %s45 = sld [smem:[#allocation3 + $0x4]]
    %v46 = vstv %s43
    %v47 = vmul.f32 %v28, %v46
    %v48 = vmul.f32 %v29, %v46
    %v49 = vmul.f32 %v30, %v46
    %v50 = vmul.f32 %v31, %v46
    %v51 = vmul.f32 %v32, %v46
    %v52 = vmul.f32 %v33, %v46
    %v53 = vmul.f32 %v34, %v46
    %v54 = vstv %s44
    %v55 = vmul.f32 %v36, %v54
    %v56 = vmul.f32 %v37, %v54
    %v57 = vmul.f32 %v38, %v54
    %v58 = vmul.f32 %v39, %v54
    %v59 = vmul.f32 %v40, %v54
    %v60 = vmul.f32 %v41, %v54
    %v61 = vmul.f32 %v42, %v54
    %v62 = vadd.f32 %v47, %v55
    %v63 = vadd.f32 %v48, %v56
    %v64 = vadd.f32 %v49, %v57
    %v65 = vadd.f32 %v50, %v58
    %v66 = vadd.f32 %v51, %v59
    %v67 = vadd.f32 %v52, %v60
    %v68 = vadd.f32 %v53, %v61
    %v69 = vstv %s45
    %v70 = vmul.f32 %v28, %v69
    %v71 = vmul.f32 %v29, %v69
    %v72 = vmul.f32 %v30, %v69
    %v73 = vmul.f32 %v31, %v69
    %v74 = vmul.f32 %v32, %v69
    %v75 = vmul.f32 %v33, %v69
    %v76 = vmul.f32 %v34, %v69
    %v84 = vrot.slane %v70, 1
    %v85 = vrot.slane %v71, 1
    %v86 = vrot.slane %v72, 1
    %v87 = vrot.slane %v73, 1
    %v88 = vrot.slane %v74, 1
    %v89 = vrot.slane %v75, 1
    %v90 = vrot.slane %v76, 1
    %v98 = vadd.f32 %v62, %v84
    %v99 = vadd.f32 %v63, %v85
    %v100 = vadd.f32 %v64, %v86
    %v101 = vadd.f32 %v65, %v87
    %v102 = vadd.f32 %v66, %v88
    %v103 = vadd.f32 %v67, %v89
    %v104 = vadd.f32 %v68, %v90
    %s105 = scalar_lea.vmem %s2, 64
    %v106 = vld [vmem:[%s105] sm:$0xff]
    %v107 = vld [vmem:[%s105 + $0x8] sm:$0xff]
    %v108 = vld [vmem:[%s105 + $0x10] sm:$0xff]
    %v109 = vld [vmem:[%s105 + $0x18] sm:$0xff]
    %v110 = vld [vmem:[%s105 + $0x20] sm:$0xff]
    %v111 = vld [vmem:[%s105 + $0x28] sm:$0xff]
    %v112 = vld [vmem:[%s105 + $0x30] sm:$0xff]
    %s113 = scalar_lea.vmem %s2, 192
    %v114 = vld [vmem:[%s113] sm:$0x7f]
    %v115 = vld [vmem:[%s113 + $0x8] sm:$0x7f]
    %v116 = vld [vmem:[%s113 + $0x10] sm:$0x7f]
    %v117 = vld [vmem:[%s113 + $0x18] sm:$0x7f]
    %v118 = vld [vmem:[%s113 + $0x20] sm:$0x7f]
    %v119 = vld [vmem:[%s113 + $0x28] sm:$0x7f]
    %v120 = vld [vmem:[%s113 + $0x30] sm:$0x7f]
    %s121 = sld [smem:[#allocation3 + $0x1]]
    %s122 = sld [smem:[#allocation3 + $0x3]]
    %s123 = sld [smem:[#allocation3 + $0x5]]
    %v124 = vstv %s121
    %v125 = vmul.f32 %v106, %v124
    %v126 = vmul.f32 %v107, %v124
    %v127 = vmul.f32 %v108, %v124
    %v128 = vmul.f32 %v109, %v124
    %v129 = vmul.f32 %v110, %v124
    %v130 = vmul.f32 %v111, %v124
    %v131 = vmul.f32 %v112, %v124
    %v132 = vstv %s122
    %v133 = vmul.f32 %v114, %v132
    %v134 = vmul.f32 %v115, %v132
    %v135 = vmul.f32 %v116, %v132
    %v136 = vmul.f32 %v117, %v132
    %v137 = vmul.f32 %v118, %v132
    %v138 = vmul.f32 %v119, %v132
    %v139 = vmul.f32 %v120, %v132
    %v140 = vadd.f32 %v125, %v133
    %v141 = vadd.f32 %v126, %v134
    %v142 = vadd.f32 %v127, %v135
    %v143 = vadd.f32 %v128, %v136
    %v144 = vadd.f32 %v129, %v137
    %v145 = vadd.f32 %v130, %v138
    %v146 = vadd.f32 %v131, %v139
    %v147 = vstv %s123
    %v148 = vmul.f32 %v106, %v147
    %v149 = vmul.f32 %v107, %v147
    %v150 = vmul.f32 %v108, %v147
    %v151 = vmul.f32 %v109, %v147
    %v152 = vmul.f32 %v110, %v147
    %v153 = vmul.f32 %v111, %v147
    %v154 = vmul.f32 %v112, %v147
    %v162 = vrot.slane %v148, 1
    %v163 = vrot.slane %v149, 1
    %v164 = vrot.slane %v150, 1
    %v165 = vrot.slane %v151, 1
    %v166 = vrot.slane %v152, 1
    %v167 = vrot.slane %v153, 1
    %v168 = vrot.slane %v154, 1
    %v176 = vadd.f32 %v140, %v162
    %v177 = vadd.f32 %v141, %v163
    %v178 = vadd.f32 %v142, %v164
    %v179 = vadd.f32 %v143, %v165
    %v180 = vadd.f32 %v144, %v166
    %v181 = vadd.f32 %v145, %v167
    %v182 = vadd.f32 %v146, %v168
    %v183 = vadd.f32 %v98, %v176
    %v184 = vadd.f32 %v99, %v177
    %v185 = vadd.f32 %v100, %v178
    %v186 = vadd.f32 %v101, %v179
    %v187 = vadd.f32 %v102, %v180
    %v188 = vadd.f32 %v103, %v181
    %v189 = vadd.f32 %v104, %v182
    %s190 = scalar_lea.vmem %s2, 256
    %v191 = vld [vmem:[%s190] sm:$0xff]
    %v192 = vld [vmem:[%s190 + $0x8] sm:$0xff]
    %v193 = vld [vmem:[%s190 + $0x10] sm:$0xff]
    %v194 = vld [vmem:[%s190 + $0x18] sm:$0xff]
    %v195 = vld [vmem:[%s190 + $0x20] sm:$0xff]
    %v196 = vld [vmem:[%s190 + $0x28] sm:$0xff]
    %v197 = vld [vmem:[%s190 + $0x30] sm:$0xff]
    %s198 = scalar_lea.vmem %s2, 384
    %v199 = vld [vmem:[%s198] sm:$0x7f]
    %v200 = vld [vmem:[%s198 + $0x8] sm:$0x7f]
    %v201 = vld [vmem:[%s198 + $0x10] sm:$0x7f]
    %v202 = vld [vmem:[%s198 + $0x18] sm:$0x7f]
    %v203 = vld [vmem:[%s198 + $0x20] sm:$0x7f]
    %v204 = vld [vmem:[%s198 + $0x28] sm:$0x7f]
    %v205 = vld [vmem:[%s198 + $0x30] sm:$0x7f]
    %s206 = sld [smem:[#allocation3 + $0x6]]
    %s207 = sld [smem:[#allocation3 + $0x8]]
    %s208 = sld [smem:[#allocation3 + $0xa]]
    %v209 = vstv %s206
    %v210 = vmul.f32 %v191, %v209
    %v211 = vmul.f32 %v192, %v209
    %v212 = vmul.f32 %v193, %v209
    %v213 = vmul.f32 %v194, %v209
    %v214 = vmul.f32 %v195, %v209
    %v215 = vmul.f32 %v196, %v209
    %v216 = vmul.f32 %v197, %v209
    %v217 = vstv %s207
    %v218 = vmul.f32 %v199, %v217
    %v219 = vmul.f32 %v200, %v217
    %v220 = vmul.f32 %v201, %v217
    %v221 = vmul.f32 %v202, %v217
    %v222 = vmul.f32 %v203, %v217
    %v223 = vmul.f32 %v204, %v217
    %v224 = vmul.f32 %v205, %v217
    %v225 = vadd.f32 %v210, %v218
    %v226 = vadd.f32 %v211, %v219
    %v227 = vadd.f32 %v212, %v220
    %v228 = vadd.f32 %v213, %v221
    %v229 = vadd.f32 %v214, %v222
    %v230 = vadd.f32 %v215, %v223
    %v231 = vadd.f32 %v216, %v224
    %v232 = vstv %s208
    %v233 = vmul.f32 %v191, %v232
    %v234 = vmul.f32 %v192, %v232
    %v235 = vmul.f32 %v193, %v232
    %v236 = vmul.f32 %v194, %v232
    %v237 = vmul.f32 %v195, %v232
    %v238 = vmul.f32 %v196, %v232
    %v239 = vmul.f32 %v197, %v232
    %v247 = vrot.slane %v233, 1
    %v248 = vrot.slane %v234, 1
    %v249 = vrot.slane %v235, 1
    %v250 = vrot.slane %v236, 1
    %v251 = vrot.slane %v237, 1
    %v252 = vrot.slane %v238, 1
    %v253 = vrot.slane %v239, 1
    %v261 = vadd.f32 %v225, %v247
    %v262 = vadd.f32 %v226, %v248
    %v263 = vadd.f32 %v227, %v249
    %v264 = vadd.f32 %v228, %v250
    %v265 = vadd.f32 %v229, %v251
    %v266 = vadd.f32 %v230, %v252
    %v267 = vadd.f32 %v231, %v253
    %v268 = vadd.f32 %v183, %v261
    %v269 = vadd.f32 %v184, %v262
    %v270 = vadd.f32 %v185, %v263
    %v271 = vadd.f32 %v186, %v264
    %v272 = vadd.f32 %v187, %v265
    %v273 = vadd.f32 %v188, %v266
    %v274 = vadd.f32 %v189, %v267
    %s275 = scalar_lea.vmem %s2, 320
    %v276 = vld [vmem:[%s275] sm:$0xff]
    %v277 = vld [vmem:[%s275 + $0x8] sm:$0xff]
    %v278 = vld [vmem:[%s275 + $0x10] sm:$0xff]
    %v279 = vld [vmem:[%s275 + $0x18] sm:$0xff]
    %v280 = vld [vmem:[%s275 + $0x20] sm:$0xff]
    %v281 = vld [vmem:[%s275 + $0x28] sm:$0xff]
    %v282 = vld [vmem:[%s275 + $0x30] sm:$0xff]
    %s283 = scalar_lea.vmem %s2, 448
    %v284 = vld [vmem:[%s283] sm:$0x7f]
    %v285 = vld [vmem:[%s283 + $0x8] sm:$0x7f]
    %v286 = vld [vmem:[%s283 + $0x10] sm:$0x7f]
    %v287 = vld [vmem:[%s283 + $0x18] sm:$0x7f]
    %v288 = vld [vmem:[%s283 + $0x20] sm:$0x7f]
    %v289 = vld [vmem:[%s283 + $0x28] sm:$0x7f]
    %v290 = vld [vmem:[%s283 + $0x30] sm:$0x7f]
    %s291 = sld [smem:[#allocation3 + $0x7]]
    %s292 = sld [smem:[#allocation3 + $0x9]]
    %s293 = sld [smem:[#allocation3 + $0xb]]
    %v294 = vstv %s291
    %v295 = vmul.f32 %v276, %v294
    %v296 = vmul.f32 %v277, %v294
    %v297 = vmul.f32 %v278, %v294
    %v298 = vmul.f32 %v279, %v294
    %v299 = vmul.f32 %v280, %v294
    %v300 = vmul.f32 %v281, %v294
    %v301 = vmul.f32 %v282, %v294
    %v302 = vstv %s292
    %v303 = vmul.f32 %v284, %v302
    %v304 = vmul.f32 %v285, %v302
    %v305 = vmul.f32 %v286, %v302
    %v306 = vmul.f32 %v287, %v302
    %v307 = vmul.f32 %v288, %v302
    %v308 = vmul.f32 %v289, %v302
    %v309 = vmul.f32 %v290, %v302
    %v310 = vadd.f32 %v295, %v303
    %v311 = vadd.f32 %v296, %v304
    %v312 = vadd.f32 %v297, %v305
    %v313 = vadd.f32 %v298, %v306
    %v314 = vadd.f32 %v299, %v307
    %v315 = vadd.f32 %v300, %v308
    %v316 = vadd.f32 %v301, %v309
    %v317 = vstv %s293
    %v318 = vmul.f32 %v276, %v317
    %v319 = vmul.f32 %v277, %v317
    %v320 = vmul.f32 %v278, %v317
    %v321 = vmul.f32 %v279, %v317
    %v322 = vmul.f32 %v280, %v317
    %v323 = vmul.f32 %v281, %v317
    %v324 = vmul.f32 %v282, %v317
    %v332 = vrot.slane %v318, 1
    %v333 = vrot.slane %v319, 1
    %v334 = vrot.slane %v320, 1
    %v335 = vrot.slane %v321, 1
    %v336 = vrot.slane %v322, 1
    %v337 = vrot.slane %v323, 1
    %v338 = vrot.slane %v324, 1
    %v346 = vadd.f32 %v310, %v332
    %v347 = vadd.f32 %v311, %v333
    %v348 = vadd.f32 %v312, %v334
    %v349 = vadd.f32 %v313, %v335
    %v350 = vadd.f32 %v314, %v336
    %v351 = vadd.f32 %v315, %v337
    %v352 = vadd.f32 %v316, %v338
    %v353 = vadd.f32 %v268, %v346
    %v354 = vadd.f32 %v269, %v347
    %v355 = vadd.f32 %v270, %v348
    %v356 = vadd.f32 %v271, %v349
    %v357 = vadd.f32 %v272, %v350
    %v358 = vadd.f32 %v273, %v351
    %v359 = vadd.f32 %v274, %v352
    %s360 = scalar_lea.vmem %s2, 8
    %v361 = vld [vmem:[%s360] sm:$0xff]
    %v362 = vld [vmem:[%s360 + $0x8] sm:$0xff]
    %v363 = vld [vmem:[%s360 + $0x10] sm:$0xff]
    %v364 = vld [vmem:[%s360 + $0x18] sm:$0xff]
    %v365 = vld [vmem:[%s360 + $0x20] sm:$0xff]
    %v366 = vld [vmem:[%s360 + $0x28] sm:$0xff]
    %v367 = vld [vmem:[%s360 + $0x30] sm:$0xff]
    %s368 = scalar_lea.vmem %s2, 136
    %v369 = vld [vmem:[%s368] sm:$0x7f]
    %v370 = vld [vmem:[%s368 + $0x8] sm:$0x7f]
    %v371 = vld [vmem:[%s368 + $0x10] sm:$0x7f]
    %v372 = vld [vmem:[%s368 + $0x18] sm:$0x7f]
    %v373 = vld [vmem:[%s368 + $0x20] sm:$0x7f]
    %v374 = vld [vmem:[%s368 + $0x28] sm:$0x7f]
    %v375 = vld [vmem:[%s368 + $0x30] sm:$0x7f]
    %s376 = sld [smem:[#allocation3 + $0xc]]
    %s377 = sld [smem:[#allocation3 + $0xe]]
    %s378 = sld [smem:[#allocation3 + $0x10]]
    %v379 = vstv %s376
    %v380 = vmul.f32 %v361, %v379
    %v381 = vmul.f32 %v362, %v379
    %v382 = vmul.f32 %v363, %v379
    %v383 = vmul.f32 %v364, %v379
    %v384 = vmul.f32 %v365, %v379
    %v385 = vmul.f32 %v366, %v379
    %v386 = vmul.f32 %v367, %v379
    %v387 = vstv %s377
    %v388 = vmul.f32 %v369, %v387
    %v389 = vmul.f32 %v370, %v387
    %v390 = vmul.f32 %v371, %v387
    %v391 = vmul.f32 %v372, %v387
    %v392 = vmul.f32 %v373, %v387
    %v393 = vmul.f32 %v374, %v387
    %v394 = vmul.f32 %v375, %v387
    %v395 = vadd.f32 %v380, %v388
    %v396 = vadd.f32 %v381, %v389
    %v397 = vadd.f32 %v382, %v390
    %v398 = vadd.f32 %v383, %v391
    %v399 = vadd.f32 %v384, %v392
    %v400 = vadd.f32 %v385, %v393
    %v401 = vadd.f32 %v386, %v394
    %v402 = vstv %s378
    %v403 = vmul.f32 %v361, %v402
    %v404 = vmul.f32 %v362, %v402
    %v405 = vmul.f32 %v363, %v402
    %v406 = vmul.f32 %v364, %v402
    %v407 = vmul.f32 %v365, %v402
    %v408 = vmul.f32 %v366, %v402
    %v409 = vmul.f32 %v367, %v402
    %v417 = vrot.slane %v403, 1
    %v418 = vrot.slane %v404, 1
    %v419 = vrot.slane %v405, 1
    %v420 = vrot.slane %v406, 1
    %v421 = vrot.slane %v407, 1
    %v422 = vrot.slane %v408, 1
    %v423 = vrot.slane %v409, 1
    %v431 = vadd.f32 %v395, %v417
    %v432 = vadd.f32 %v396, %v418
    %v433 = vadd.f32 %v397, %v419
    %v434 = vadd.f32 %v398, %v420
    %v435 = vadd.f32 %v399, %v421
    %v436 = vadd.f32 %v400, %v422
    %v437 = vadd.f32 %v401, %v423
    %v438 = vadd.f32 %v353, %v431
    %v439 = vadd.f32 %v354, %v432
    %v440 = vadd.f32 %v355, %v433
    %v441 = vadd.f32 %v356, %v434
    %v442 = vadd.f32 %v357, %v435
    %v443 = vadd.f32 %v358, %v436
    %v444 = vadd.f32 %v359, %v437
    %s445 = scalar_lea.vmem %s2, 72
    %v446 = vld [vmem:[%s445] sm:$0xff]
    %v447 = vld [vmem:[%s445 + $0x8] sm:$0xff]
    %v448 = vld [vmem:[%s445 + $0x10] sm:$0xff]
    %v449 = vld [vmem:[%s445 + $0x18] sm:$0xff]
    %v450 = vld [vmem:[%s445 + $0x20] sm:$0xff]
    %v451 = vld [vmem:[%s445 + $0x28] sm:$0xff]
    %v452 = vld [vmem:[%s445 + $0x30] sm:$0xff]
    %s453 = scalar_lea.vmem %s2, 200
    %v454 = vld [vmem:[%s453] sm:$0x7f]
    %v455 = vld [vmem:[%s453 + $0x8] sm:$0x7f]
    %v456 = vld [vmem:[%s453 + $0x10] sm:$0x7f]
    %v457 = vld [vmem:[%s453 + $0x18] sm:$0x7f]
    %v458 = vld [vmem:[%s453 + $0x20] sm:$0x7f]
    %v459 = vld [vmem:[%s453 + $0x28] sm:$0x7f]
    %v460 = vld [vmem:[%s453 + $0x30] sm:$0x7f]
    %s461 = sld [smem:[#allocation3 + $0xd]]
    %s462 = sld [smem:[#allocation3 + $0xf]]
    %s463 = sld [smem:[#allocation3 + $0x11]]
    %v464 = vstv %s461
    %v465 = vmul.f32 %v446, %v464
    %v466 = vmul.f32 %v447, %v464
    %v467 = vmul.f32 %v448, %v464
    %v468 = vmul.f32 %v449, %v464
    %v469 = vmul.f32 %v450, %v464
    %v470 = vmul.f32 %v451, %v464
    %v471 = vmul.f32 %v452, %v464
    %v472 = vstv %s462
    %v473 = vmul.f32 %v454, %v472
    %v474 = vmul.f32 %v455, %v472
    %v475 = vmul.f32 %v456, %v472
    %v476 = vmul.f32 %v457, %v472
    %v477 = vmul.f32 %v458, %v472
    %v478 = vmul.f32 %v459, %v472
    %v479 = vmul.f32 %v460, %v472
    %v480 = vadd.f32 %v465, %v473
    %v481 = vadd.f32 %v466, %v474
    %v482 = vadd.f32 %v467, %v475
    %v483 = vadd.f32 %v468, %v476
    %v484 = vadd.f32 %v469, %v477
    %v485 = vadd.f32 %v470, %v478
    %v486 = vadd.f32 %v471, %v479
    %v487 = vstv %s463
    %v488 = vmul.f32 %v446, %v487
    %v489 = vmul.f32 %v447, %v487
    %v490 = vmul.f32 %v448, %v487
    %v491 = vmul.f32 %v449, %v487
    %v492 = vmul.f32 %v450, %v487
    %v493 = vmul.f32 %v451, %v487
    %v494 = vmul.f32 %v452, %v487
    %v502 = vrot.slane %v488, 1
    %v503 = vrot.slane %v489, 1
    %v504 = vrot.slane %v490, 1
    %v505 = vrot.slane %v491, 1
    %v506 = vrot.slane %v492, 1
    %v507 = vrot.slane %v493, 1
    %v508 = vrot.slane %v494, 1
    %v516 = vadd.f32 %v480, %v502
    %v517 = vadd.f32 %v481, %v503
    %v518 = vadd.f32 %v482, %v504
    %v519 = vadd.f32 %v483, %v505
    %v520 = vadd.f32 %v484, %v506
    %v521 = vadd.f32 %v485, %v507
    %v522 = vadd.f32 %v486, %v508
    %v523 = vadd.f32 %v438, %v516
    %v524 = vadd.f32 %v439, %v517
    %v525 = vadd.f32 %v440, %v518
    %v526 = vadd.f32 %v441, %v519
    %v527 = vadd.f32 %v442, %v520
    %v528 = vadd.f32 %v443, %v521
    %v529 = vadd.f32 %v444, %v522
    %s530 = scalar_lea.vmem %s2, 264
    %v531 = vld [vmem:[%s530] sm:$0xff]
    %v532 = vld [vmem:[%s530 + $0x8] sm:$0xff]
    %v533 = vld [vmem:[%s530 + $0x10] sm:$0xff]
    %v534 = vld [vmem:[%s530 + $0x18] sm:$0xff]
    %v535 = vld [vmem:[%s530 + $0x20] sm:$0xff]
    %v536 = vld [vmem:[%s530 + $0x28] sm:$0xff]
    %v537 = vld [vmem:[%s530 + $0x30] sm:$0xff]
    %s538 = scalar_lea.vmem %s2, 392
    %v539 = vld [vmem:[%s538] sm:$0x7f]
    %v540 = vld [vmem:[%s538 + $0x8] sm:$0x7f]
    %v541 = vld [vmem:[%s538 + $0x10] sm:$0x7f]
    %v542 = vld [vmem:[%s538 + $0x18] sm:$0x7f]
    %v543 = vld [vmem:[%s538 + $0x20] sm:$0x7f]
    %v544 = vld [vmem:[%s538 + $0x28] sm:$0x7f]
    %v545 = vld [vmem:[%s538 + $0x30] sm:$0x7f]
    %s546 = sld [smem:[#allocation3 + $0x12]]
    %s547 = sld [smem:[#allocation3 + $0x14]]
    %s548 = sld [smem:[#allocation3 + $0x16]]
    %v549 = vstv %s546
    %v550 = vmul.f32 %v531, %v549
    %v551 = vmul.f32 %v532, %v549
    %v552 = vmul.f32 %v533, %v549
    %v553 = vmul.f32 %v534, %v549
    %v554 = vmul.f32 %v535, %v549
    %v555 = vmul.f32 %v536, %v549
    %v556 = vmul.f32 %v537, %v549
    %v557 = vstv %s547
    %v558 = vmul.f32 %v539, %v557
    %v559 = vmul.f32 %v540, %v557
    %v560 = vmul.f32 %v541, %v557
    %v561 = vmul.f32 %v542, %v557
    %v562 = vmul.f32 %v543, %v557
    %v563 = vmul.f32 %v544, %v557
    %v564 = vmul.f32 %v545, %v557
    %v565 = vadd.f32 %v550, %v558
    %v566 = vadd.f32 %v551, %v559
    %v567 = vadd.f32 %v552, %v560
    %v568 = vadd.f32 %v553, %v561
    %v569 = vadd.f32 %v554, %v562
    %v570 = vadd.f32 %v555, %v563
    %v571 = vadd.f32 %v556, %v564
    %v572 = vstv %s548
    %v573 = vmul.f32 %v531, %v572
    %v574 = vmul.f32 %v532, %v572
    %v575 = vmul.f32 %v533, %v572
    %v576 = vmul.f32 %v534, %v572
    %v577 = vmul.f32 %v535, %v572
    %v578 = vmul.f32 %v536, %v572
    %v579 = vmul.f32 %v537, %v572
    %v587 = vrot.slane %v573, 1
    %v588 = vrot.slane %v574, 1
    %v589 = vrot.slane %v575, 1
    %v590 = vrot.slane %v576, 1
    %v591 = vrot.slane %v577, 1
    %v592 = vrot.slane %v578, 1
    %v593 = vrot.slane %v579, 1
    %v601 = vadd.f32 %v565, %v587
    %v602 = vadd.f32 %v566, %v588
    %v603 = vadd.f32 %v567, %v589
    %v604 = vadd.f32 %v568, %v590
    %v605 = vadd.f32 %v569, %v591
    %v606 = vadd.f32 %v570, %v592
    %v607 = vadd.f32 %v571, %v593
    %v608 = vadd.f32 %v523, %v601
    %v609 = vadd.f32 %v524, %v602
    %v610 = vadd.f32 %v525, %v603
    %v611 = vadd.f32 %v526, %v604
    %v612 = vadd.f32 %v527, %v605
    %v613 = vadd.f32 %v528, %v606
    %v614 = vadd.f32 %v529, %v607
    %s615 = scalar_lea.vmem %s2, 328
    %v616 = vld [vmem:[%s615] sm:$0xff]
    %v617 = vld [vmem:[%s615 + $0x8] sm:$0xff]
    %v618 = vld [vmem:[%s615 + $0x10] sm:$0xff]
    %v619 = vld [vmem:[%s615 + $0x18] sm:$0xff]
    %v620 = vld [vmem:[%s615 + $0x20] sm:$0xff]
    %v621 = vld [vmem:[%s615 + $0x28] sm:$0xff]
    %v622 = vld [vmem:[%s615 + $0x30] sm:$0xff]
    %s623 = scalar_lea.vmem %s2, 456
    %v624 = vld [vmem:[%s623] sm:$0x7f]
    %v625 = vld [vmem:[%s623 + $0x8] sm:$0x7f]
    %v626 = vld [vmem:[%s623 + $0x10] sm:$0x7f]
    %v627 = vld [vmem:[%s623 + $0x18] sm:$0x7f]
    %v628 = vld [vmem:[%s623 + $0x20] sm:$0x7f]
    %v629 = vld [vmem:[%s623 + $0x28] sm:$0x7f]
    %v630 = vld [vmem:[%s623 + $0x30] sm:$0x7f]
    %s631 = sld [smem:[#allocation3 + $0x13]]
    %s632 = sld [smem:[#allocation3 + $0x15]]
    %s633 = sld [smem:[#allocation3 + $0x17]]
    %v634 = vstv %s631
    %v635 = vmul.f32 %v616, %v634
    %v636 = vmul.f32 %v617, %v634
    %v637 = vmul.f32 %v618, %v634
    %v638 = vmul.f32 %v619, %v634
    %v639 = vmul.f32 %v620, %v634
    %v640 = vmul.f32 %v621, %v634
    %v641 = vmul.f32 %v622, %v634
    %v642 = vstv %s632
    %v643 = vmul.f32 %v624, %v642
    %v644 = vmul.f32 %v625, %v642
    %v645 = vmul.f32 %v626, %v642
    %v646 = vmul.f32 %v627, %v642
    %v647 = vmul.f32 %v628, %v642
    %v648 = vmul.f32 %v629, %v642
    %v649 = vmul.f32 %v630, %v642
    %v650 = vadd.f32 %v635, %v643
    %v651 = vadd.f32 %v636, %v644
    %v652 = vadd.f32 %v637, %v645
    %v653 = vadd.f32 %v638, %v646
    %v654 = vadd.f32 %v639, %v647
    %v655 = vadd.f32 %v640, %v648
    %v656 = vadd.f32 %v641, %v649
    %v657 = vstv %s633
    %v658 = vmul.f32 %v616, %v657
    %v659 = vmul.f32 %v617, %v657
    %v660 = vmul.f32 %v618, %v657
    %v661 = vmul.f32 %v619, %v657
    %v662 = vmul.f32 %v620, %v657
    %v663 = vmul.f32 %v621, %v657
    %v664 = vmul.f32 %v622, %v657
    %v672 = vrot.slane %v658, 1
    %v673 = vrot.slane %v659, 1
    %v674 = vrot.slane %v660, 1
    %v675 = vrot.slane %v661, 1
    %v676 = vrot.slane %v662, 1
    %v677 = vrot.slane %v663, 1
    %v678 = vrot.slane %v664, 1
    %v686 = vadd.f32 %v650, %v672
    %v687 = vadd.f32 %v651, %v673
    %v688 = vadd.f32 %v652, %v674
    %v689 = vadd.f32 %v653, %v675
    %v690 = vadd.f32 %v654, %v676
    %v691 = vadd.f32 %v655, %v677
    %v692 = vadd.f32 %v656, %v678
    %v693 = vadd.f32 %v608, %v686
    %v694 = vadd.f32 %v609, %v687
    %v695 = vadd.f32 %v610, %v688
    %v696 = vadd.f32 %v611, %v689
    %v697 = vadd.f32 %v612, %v690
    %v698 = vadd.f32 %v613, %v691
    %v699 = vadd.f32 %v614, %v692
    %s700 = sld [smem:[#allocation2]]
    %v701 = vstv %s700
    %v702 = vmax.f32 %v693, %v694
    %v703 = vmax.f32 %v702, %v695
    %v705 = vrot.slane %v703, 1
    %v707 = vmax.f32 %v703, %v705
    %v708 = vrot.slane %v703, 2
    %v710 = vmax.f32 %v707, %v708
    %v712 = vrot.slane %v710, 1
    %v714 = vrot.slane %v710, 2
    %vm716 = vcmask 1040384
    %v717 = vsel %vm716, %v710, %v712
    %vm718 = vcmask 1041408
    %v719 = vsel %vm718, %v717, %v714
    %v720 = vadd.f32 %v719, %v701
    %v721 = vmax.f32 %v720, 0.0
    %722 = vst [vmem:[%s3] sm:$0x7] %v721
    %v723 = vmax.f32 %v695, %v696
    %v724 = vmax.f32 %v723, %v697
    %v726 = vrot.slane %v724, 1
    %v728 = vmax.f32 %v724, %v726
    %v729 = vrot.slane %v724, 2
    %v731 = vmax.f32 %v728, %v729
    %v733 = vrot.slane %v731, 1
    %v735 = vrot.slane %v731, 2
    %v737 = vsel %vm716, %v731, %v733
    %v738 = vsel %vm718, %v737, %v735
    %v739 = vadd.f32 %v738, %v701
    %v740 = vmax.f32 %v739, 0.0
    %s741 = scalar_lea.vmem %s3, 4
    %742 = vst [vmem:[%s741] sm:$0x7] %v740
    %v743 = vmax.f32 %v697, %v698
    %v744 = vmax.f32 %v743, %v699
    %v746 = vrot.slane %v744, 1
    %v748 = vmax.f32 %v744, %v746
    %v749 = vrot.slane %v744, 2
    %v751 = vmax.f32 %v748, %v749
    %v753 = vrot.slane %v751, 1
    %v755 = vrot.slane %v751, 2
    %v757 = vsel %vm716, %v751, %v753
    %v758 = vsel %vm718, %v757, %v755
    %v759 = vadd.f32 %v758, %v701
    %v760 = vmax.f32 %v759, 0.0
    %s761 = scalar_lea.vmem %s3, 8
    %762 = vst [vmem:[%s761] sm:$0x7] %v760
    // Predicated region
    $region18: #{net1_forward.1} parent=1 // pred_check
      _
    $region19: #{net1_forward.1} parent=1 // pred_check_branch
      %764 = sbr.rel (0) target = $region21
    $region20: #{net1_forward.1} parent=1 // pred_region
      _
    $region21: #{net1_forward.1} parent=1 // pred_fallthru
      _
    // Predicated region
    $region22: #{net1_forward.1} parent=1 // pred_check
      _
    $region23: #{net1_forward.1} parent=1 // pred_check_branch
      %766 = sbr.rel (0) target = $region25
    $region24: #{net1_forward.1} parent=1 // pred_region
      _
    $region25: #{net1_forward.1} parent=1 // pred_fallthru
      _
    %767 = vsyncpa [#allocation4], 1

</llo_original>
